<compile_context>
chip_gen: v5e
topology: v5e:2x2
jax: 0.10.0
libtpu: 0.0.40
codegen_flags: <defaults>
</compile_context>

<pallas_src>
import jax
import jax.numpy as jnp
import numpy as np
from jax.experimental import pallas as pl
from jax.experimental.pallas import tpu as pltpu

# ---- toy shapes consistent with the module ---------------------------------
B = 2                         # trajectories
T = 32                        # timesteps per trajectory
T_TILE = 16                   # time rows per grid step (multiple of 16: bf16 sublane pack)
NT = T // T_TILE              # time blocks (grid reduction axis)
H_IMG = W_IMG = 16            # spatial stand-in for 128x128
C_IMG = 3
D_IN = H_IMG * W_IMG * C_IMG  # 768 flattened frame features
E = 128                       # vpt_policy.output_latent_size (lane-dense: one full vreg lane)
A = 16                        # action embedding dim
HID = 128                     # reward head hidden dim
assert E == HID               # packed bias/param rows share one (3, HID) slab
assert T % T_TILE == 0


# -----------------------------------------------------------------------------
# Fused kernel: encoder + reward head + per-trajectory time reduction
# -----------------------------------------------------------------------------
def _traj_reward_kernel(x_ref, act_ref, wenc_ref, w1_ref, vp_ref, b2_ref,
                        emb_ref, rew_ref):
    tk = pl.program_id(1)

    # --- obs encoder: emb = tanh(x @ W_enc + b_enc) --------------------------
    # x / W_enc arrive as bf16 (half the HBM bytes); MXU accumulates in f32 and
    # all elementwise math stays f32.
    emb = jnp.tanh(
        jnp.dot(x_ref[...], wenc_ref[...], preferred_element_type=jnp.float32)
        + vp_ref[0:1, :])                                   # (T_TILE, E) f32
    emb_ref[...] = emb                                       # lane-dense (E=128) store

    # --- reward head hidden layer: relu(emb @ W1e + act @ W1a + b1) ----------
    h = jnp.dot(emb, w1_ref[0:E, :], preferred_element_type=jnp.float32)
    h = h + jnp.dot(act_ref[...], w1_ref[E:E + A, :],
                    preferred_element_type=jnp.float32)
    h = jnp.maximum(h + vp_ref[1:2, :], 0.0)                 # (T_TILE, HID) f32

    # --- per-step reward r_t = h_t . w2 + b2, summed over this time tile -----
    # (VPU multiply + lane/sublane reduce; no N=1 selector matmul, no MXU.)
    w2row = vp_ref[2:3, :]                                   # (1, HID)
    r_rows = jnp.sum(h * w2row, axis=1, keepdims=True)       # (T_TILE, 1)
    part = jnp.sum(r_rows, axis=0, keepdims=True)            # (1, 1)
    part = part + float(T_TILE) * b2_ref[0, 0]               # + b2 per timestep

    # --- accumulate the trajectory total in the resident output block --------
    @pl.when(tk == 0)
    def _():
        rew_ref[...] = jnp.zeros_like(rew_ref)
    rew_ref[...] += part[None]                               # (1, 1, 1)


def _fused_traj_reward(x_flat, act_flat, w_enc, w1, vp, b2):
    bt = x_flat.shape[0]
    return pl.pallas_call(
        _traj_reward_kernel,
        out_shape=(
            jax.ShapeDtypeStruct((bt, E), jnp.float32),      # obs embeddings
            jax.ShapeDtypeStruct((B, 1, 1), jnp.float32),    # trajectory totals
        ),
        grid_spec=pltpu.PrefetchScalarGridSpec(
            num_scalar_prefetch=0,
            grid=(B, NT),                                    # reduction axis last
            in_specs=[
                pl.BlockSpec((T_TILE, D_IN), lambda b, k: (b * NT + k, 0)),
                pl.BlockSpec((T_TILE, A),    lambda b, k: (b * NT + k, 0)),
                pl.BlockSpec((D_IN, E),      lambda b, k: (0, 0)),   # resident weights
                pl.BlockSpec((E + A, HID),   lambda b, k: (0, 0)),   # stacked [W1e; W1a]
                pl.BlockSpec((3, HID),       lambda b, k: (0, 0)),   # [b_enc; b1; w2]
                pl.BlockSpec(memory_space=pltpu.MemorySpace.SMEM),   # b2 scalar
            ],
            out_specs=[
                pl.BlockSpec((T_TILE, E), lambda b, k: (b * NT + k, 0)),
                pl.BlockSpec((1, 1, 1),   lambda b, k: (b, 0, 0)),   # accumulator
            ],
        ),
        compiler_params=pltpu.CompilerParams(
            dimension_semantics=("parallel", "arbitrary"),
            # headroom for larger row tiles at realistic D_IN; fits every gen
            vmem_limit_bytes=32 * 1024 * 1024,
        ),
    )(x_flat, act_flat, w_enc, w1, vp, b2)


# -----------------------------------------------------------------------------
# Wrapper mirroring TrajectoryRewardEvaluator.get_total_trajectory_reward
# -----------------------------------------------------------------------------
def get_total_trajectory_reward(params, observations, actions):
    """observations: (B, T, H, W, C); actions: (B, T, A)
    returns (reward_total (B, 1), obs_emb_all (B, T, E))"""
    b, t = observations.shape[:2]
    assert (b, t) == (B, T)
    x_flat = observations.reshape(b * t, -1).astype(jnp.bfloat16)
    act_flat = actions.reshape(b * t, -1).astype(jnp.float32)
    emb_flat, rew = _fused_traj_reward(
        x_flat, act_flat, params["w_enc"], params["w1"], params["vp"], params["b2"])
    return rew.reshape(b, 1), emb_flat.reshape(b, t, E)


def init_params(key):
    ks = jax.random.split(key, 7)
    s = 0.02
    w_enc = s * jax.random.normal(ks[0], (D_IN, E), jnp.float32)
    b_enc = s * jax.random.normal(ks[1], (E,), jnp.float32)
    w1e = s * jax.random.normal(ks[2], (E, HID), jnp.float32)
    w1a = s * jax.random.normal(ks[3], (A, HID), jnp.float32)
    b1 = s * jax.random.normal(ks[4], (HID,), jnp.float32)
    w2 = s * jax.random.normal(ks[5], (HID,), jnp.float32)
    b2 = s * jax.random.normal(ks[6], (1, 1), jnp.float32)
    return {
        "w_enc": w_enc.astype(jnp.bfloat16),            # bf16 HBM stream
        "w1": jnp.concatenate([w1e, w1a], axis=0),       # (E+A, HID) stacked
        "vp": jnp.stack([b_enc, b1, w2], axis=0),        # (3, HID) packed vector params
        "b2": b2,                                        # (1, 1) SMEM scalar
    }


def _reference(params, observations, actions):
    b, t = observations.shape[:2]
    x = observations.reshape(b * t, -1).astype(jnp.bfloat16).astype(jnp.float32)
    w_enc = params["w_enc"].astype(jnp.float32)
    b_enc, b1, w2 = params["vp"][0], params["vp"][1], params["vp"][2]
    emb = jnp.tanh(x @ w_enc + b_enc)
    a = actions.reshape(b * t, -1).astype(jnp.float32)
    h = jnp.maximum(emb @ params["w1"][:E] + a @ params["w1"][E:] + b1, 0.0)
    r = (h @ w2)[:, None] + params["b2"][0, 0]           # (b*t, 1)
    total = r.reshape(b, t).sum(axis=1, keepdims=True)
    return total, emb.reshape(b, t, E)


if __name__ == "__main__":
    key = jax.random.PRNGKey(0)
    k_obs, k_act, k_p = jax.random.split(key, 3)

    observations = jax.random.normal(k_obs, (B, T, H_IMG, W_IMG, C_IMG), jnp.float32)
    actions = jax.random.normal(k_act, (B, T, A), jnp.float32)
    params = init_params(k_p)

    reward_total, obs_emb_all = get_total_trajectory_reward(params, observations, actions)
    reward_total = jax.block_until_ready(reward_total)
    obs_emb_all = jax.block_until_ready(obs_emb_all)

    ref_total, ref_emb = _reference(params, observations, actions)
    assert reward_total.shape == (B, 1)
    assert obs_emb_all.shape == (B, T, E)
    assert np.allclose(np.asarray(obs_emb_all), np.asarray(ref_emb),
                       atol=2e-4, rtol=2e-4)
    assert np.allclose(np.asarray(reward_total), np.asarray(ref_total),
                       atol=1e-3, rtol=1e-3)

    print("KERNEL_OK")
</pallas_src>

<mosaic_0001>
module attributes {stable_mosaic.version = 11 : i64} {
  func.func @_traj_reward_kernel(%arg0: i32, %arg1: i32, %arg2: memref<16x768xbf16, #tpu.memory_space<vmem>>, %arg3: memref<16x16xf32, #tpu.memory_space<vmem>>, %arg4: memref<768x128xbf16, #tpu.memory_space<vmem>>, %arg5: memref<144x128xf32, #tpu.memory_space<vmem>>, %arg6: memref<3x128xf32, #tpu.memory_space<vmem>>, %arg7: memref<1x1xf32, #tpu.memory_space<smem>>, %arg8: memref<16x128xf32, #tpu.memory_space<vmem>>, %arg9: memref<1x1x1xf32, #tpu.memory_space<vmem>>) attributes {dimension_semantics = [#tpu.dimension_semantics<parallel>, #tpu.dimension_semantics<arbitrary>], iteration_bounds = array<i64: 2, 2>, scalar_prefetch = 0 : i64, scratch_operands = 0 : i64, tpu.core_type = #tpu.core_type<tc>, window_params = [{transform_indices = @transform_0, window_bounds = array<i64: 16, 768>}, {transform_indices = @transform_1, window_bounds = array<i64: 16, 16>}, {pipeline_mode = #tpu.pipeline_mode<synchronous>, transform_indices = @transform_2, window_bounds = array<i64: 768, 128>}, {pipeline_mode = #tpu.pipeline_mode<synchronous>, transform_indices = @transform_3, window_bounds = array<i64: 144, 128>}, {pipeline_mode = #tpu.pipeline_mode<synchronous>, transform_indices = @transform_4, window_bounds = array<i64: 3, 128>}, {transform_indices = @transform_5, window_bounds = array<i64: 1, 1>}, {transform_indices = @transform_6, window_bounds = array<i64: 16, 128>}, {transform_indices = @transform_7, window_bounds = array<i64: 1, 1, 1>}]} {
    %c0 = arith.constant 0 : index
    %c0_0 = arith.constant 0 : index
    %0 = vector.load %arg2[%c0, %c0_0] : memref<16x768xbf16, #tpu.memory_space<vmem>>, vector<16x768xbf16>
    %c0_1 = arith.constant 0 : index
    %c0_2 = arith.constant 0 : index
    %1 = vector.load %arg4[%c0_1, %c0_2] : memref<768x128xbf16, #tpu.memory_space<vmem>>, vector<768x128xbf16>
    %cst = arith.constant dense<0.000000e+00> : vector<16x128xf32>
    %2 = tpu.matmul %0, %1, %cst {dimension_numbers = #tpu.dot_dimension_numbers<[1], [0], [0], [1], [0, 0, 1, 1], [], []>} : vector<16x768xbf16>, vector<768x128xbf16>, vector<16x128xf32> -> vector<16x128xf32>
    %c0_3 = arith.constant 0 : index
    %c0_4 = arith.constant 0 : index
    %3 = vector.load %arg6[%c0_3, %c0_4] : memref<3x128xf32, #tpu.memory_space<vmem>>, vector<1x128xf32>
    %4 = vector.broadcast %3 : vector<1x128xf32> to vector<16x128xf32>
    %5 = arith.addf %2, %4 : vector<16x128xf32>
    %6 = math.tanh %5 : vector<16x128xf32>
    %c0_5 = arith.constant 0 : index
    %c0_6 = arith.constant 0 : index
    %7 = vector.load %arg8[%c0_5, %c0_6] : memref<16x128xf32, #tpu.memory_space<vmem>>, vector<16x128xf32>
    tpu.vector_store %arg8[%c0_5, %c0_6], %6 {strides = array<i32>} : memref<16x128xf32, #tpu.memory_space<vmem>>, vector<16x128xf32>,
    %c0_7 = arith.constant 0 : index
    %c0_8 = arith.constant 0 : index
    %8 = vector.load %arg5[%c0_7, %c0_8] : memref<144x128xf32, #tpu.memory_space<vmem>>, vector<128x128xf32>
    %cst_9 = arith.constant dense<0.000000e+00> : vector<16x128xf32>
    %9 = tpu.matmul %6, %8, %cst_9 {dimension_numbers = #tpu.dot_dimension_numbers<[1], [0], [0], [1], [0, 0, 1, 1], [], []>} : vector<16x128xf32>, vector<128x128xf32>, vector<16x128xf32> -> vector<16x128xf32>
    %c0_10 = arith.constant 0 : index
    %c0_11 = arith.constant 0 : index
    %10 = vector.load %arg3[%c0_10, %c0_11] : memref<16x16xf32, #tpu.memory_space<vmem>>, vector<16x16xf32>
    %c128 = arith.constant 128 : index
    %c0_12 = arith.constant 0 : index
    %11 = vector.load %arg5[%c128, %c0_12] : memref<144x128xf32, #tpu.memory_space<vmem>>, vector<16x128xf32>
    %cst_13 = arith.constant dense<0.000000e+00> : vector<16x128xf32>
    %12 = tpu.matmul %10, %11, %cst_13 {dimension_numbers = #tpu.dot_dimension_numbers<[1], [0], [0], [1], [0, 0, 1, 1], [], []>} : vector<16x16xf32>, vector<16x128xf32>, vector<16x128xf32> -> vector<16x128xf32>
    %13 = arith.addf %9, %12 : vector<16x128xf32>
    %c1 = arith.constant 1 : index
    %c0_14 = arith.constant 0 : index
    %14 = vector.load %arg6[%c1, %c0_14] : memref<3x128xf32, #tpu.memory_space<vmem>>, vector<1x128xf32>
    %15 = vector.broadcast %14 : vector<1x128xf32> to vector<16x128xf32>
    %16 = arith.addf %13, %15 : vector<16x128xf32>
    %cst_15 = arith.constant 0.000000e+00 : f32
    %17 = vector.broadcast %cst_15 : f32 to vector<16x128xf32>
    %18 = arith.maximumf %16, %17 : vector<16x128xf32>
    %c2 = arith.constant 2 : index
    %c0_16 = arith.constant 0 : index
    %19 = vector.load %arg6[%c2, %c0_16] : memref<3x128xf32, #tpu.memory_space<vmem>>, vector<1x128xf32>
    %20 = vector.broadcast %19 : vector<1x128xf32> to vector<16x128xf32>
    %21 = arith.mulf %18, %20 : vector<16x128xf32>
    %cst_17 = arith.constant dense<0.000000e+00> : vector<16xf32>
    %22 = vector.multi_reduction <add>, %21, %cst_17 [1] : vector<16x128xf32> to vector<16xf32>
    %23 = vector.shape_cast %22 : vector<16xf32> to vector<16x1xf32>
    %cst_18 = arith.constant dense<0.000000e+00> : vector<1xf32>
    %24 = vector.multi_reduction <add>, %23, %cst_18 [0] : vector<16x1xf32> to vector<1xf32>
    %25 = vector.shape_cast %24 : vector<1xf32> to vector<1x1xf32>
    %c0_19 = arith.constant 0 : index
    %c0_20 = arith.constant 0 : index
    %26 = memref.load %arg7[%c0_19, %c0_20] : memref<1x1xf32, #tpu.memory_space<smem>>
    %cst_21 = arith.constant 1.600000e+01 : f32
    %27 = arith.mulf %cst_21, %26 : f32
    %28 = vector.broadcast %27 : f32 to vector<1x1xf32>
    %29 = arith.addf %25, %28 : vector<1x1xf32>
    %c0_i32 = arith.constant 0 : i32
    %30 = arith.cmpi eq, %arg1, %c0_i32 : i32
    %31 = arith.extui %30 : i1 to i32
    %c0_i32_22 = arith.constant 0 : i32
    %32 = arith.cmpi ne, %31, %c0_i32_22 : i32
    scf.if %32 {
      %cst_29 = arith.constant 0.000000e+00 : f32
      %37 = vector.broadcast %cst_29 : f32 to vector<1x1x1xf32>
      %c0_30 = arith.constant 0 : index
      %c0_31 = arith.constant 0 : index
      %c0_32 = arith.constant 0 : index
      %38 = vector.load %arg9[%c0_30, %c0_31, %c0_32] : memref<1x1x1xf32, #tpu.memory_space<vmem>>, vector<1x1x1xf32>
      tpu.vector_store %arg9[%c0_30, %c0_31, %c0_32], %37 {strides = array<i32>} : memref<1x1x1xf32, #tpu.memory_space<vmem>>, vector<1x1x1xf32>,
    } else {
    }
    %c0_23 = arith.constant 0 : index
    %c0_24 = arith.constant 0 : index
    %c0_25 = arith.constant 0 : index
    %33 = vector.load %arg9[%c0_23, %c0_24, %c0_25] : memref<1x1x1xf32, #tpu.memory_space<vmem>>, vector<1x1x1xf32>
    %34 = vector.shape_cast %29 : vector<1x1xf32> to vector<1x1x1xf32>
    %35 = arith.addf %33, %34 : vector<1x1x1xf32>
    %c0_26 = arith.constant 0 : index
    %c0_27 = arith.constant 0 : index
    %c0_28 = arith.constant 0 : index
    %36 = vector.load %arg9[%c0_26, %c0_27, %c0_28] : memref<1x1x1xf32, #tpu.memory_space<vmem>>, vector<1x1x1xf32>
    tpu.vector_store %arg9[%c0_26, %c0_27, %c0_28], %35 {strides = array<i32>} : memref<1x1x1xf32, #tpu.memory_space<vmem>>, vector<1x1x1xf32>,
    return
  }
  func.func @transform_0(%arg0: i32, %arg1: i32) -> (i32, i32) {
    %c2_i32 = arith.constant 2 : i32
    %0 = arith.muli %arg0, %c2_i32 : i32
    %1 = arith.addi %0, %arg1 : i32
    %c0_i32 = arith.constant 0 : i32
    %c0_i32_0 = arith.constant 0 : i32
    return %1, %c0_i32 : i32, i32
  }
  func.func @transform_1(%arg0: i32, %arg1: i32) -> (i32, i32) {
    %c2_i32 = arith.constant 2 : i32
    %0 = arith.muli %arg0, %c2_i32 : i32
    %1 = arith.addi %0, %arg1 : i32
    %c0_i32 = arith.constant 0 : i32
    %c0_i32_0 = arith.constant 0 : i32
    return %1, %c0_i32 : i32, i32
  }
  func.func @transform_2(%arg0: i32, %arg1: i32) -> (i32, i32) {
    %c0_i32 = arith.constant 0 : i32
    %c0_i32_0 = arith.constant 0 : i32
    %c0_i32_1 = arith.constant 0 : i32
    return %c0_i32, %c0_i32_0 : i32, i32
  }
  func.func @transform_3(%arg0: i32, %arg1: i32) -> (i32, i32) {
    %c0_i32 = arith.constant 0 : i32
    %c0_i32_0 = arith.constant 0 : i32
    %c0_i32_1 = arith.constant 0 : i32
    return %c0_i32, %c0_i32_0 : i32, i32
  }
  func.func @transform_4(%arg0: i32, %arg1: i32) -> (i32, i32) {
    %c0_i32 = arith.constant 0 : i32
    %c0_i32_0 = arith.constant 0 : i32
    %c0_i32_1 = arith.constant 0 : i32
    return %c0_i32, %c0_i32_0 : i32, i32
  }
  func.func @transform_5(%arg0: i32, %arg1: i32) -> (i32, i32) {
    %c0_i32 = arith.constant 0 : i32
    %c0_i32_0 = arith.constant 0 : i32
    %c0_i32_1 = arith.constant 0 : i32
    return %c0_i32, %c0_i32_0 : i32, i32
  }
  func.func @transform_6(%arg0: i32, %arg1: i32) -> (i32, i32) {
    %c2_i32 = arith.constant 2 : i32
    %0 = arith.muli %arg0, %c2_i32 : i32
    %1 = arith.addi %0, %arg1 : i32
    %c0_i32 = arith.constant 0 : i32
    %c0_i32_0 = arith.constant 0 : i32
    return %1, %c0_i32 : i32, i32
  }
  func.func @transform_7(%arg0: i32, %arg1: i32) -> (i32, i32, i32) {
    %c0_i32 = arith.constant 0 : i32
    %c0_i32_0 = arith.constant 0 : i32
    %c0_i32_1 = arith.constant 0 : i32
    return %arg0, %c0_i32, %c0_i32_0 : i32, i32, i32
  }
}

</mosaic_0001>

<llo_original>
// kernel: tpu_custom_call.1
$region0: #{tpu_custom_call.1}
  #allocation0 [shape = 'u32[]', space=smem, size = 0x4, offset = 0x4, fixed_abs, tag = 'smem constant byte address 0x4 - core index']
  #allocation1 [shape = 'u32[72,128]{1,0:T(1,128)}', space=vmem, size = 0x9000, scoped, tag = 'internal scratch']
  #allocation2 [shape = 'f32[1,1]{1,0:T(1,128)S(6)}', space=smem, size = 0x200, scoped, tag = 'scoped memory for tpu_custom_call.1']
  %s0 = inlined_call_operand.hbm [shape: bf16[64,768], index: 0, kind: input, shape index: {}]
  %s1 = inlined_call_operand.vmem [shape: f32[64,16], index: 1, kind: input, shape index: {}]
  %s2 = inlined_call_operand.hbm [shape: bf16[768,128], index: 2, kind: input, shape index: {}]
  %s3 = inlined_call_operand.hbm [shape: f32[144,128], index: 3, kind: input, shape index: {}]
  %s4 = inlined_call_operand.vmem [shape: f32[3,128], index: 4, kind: input, shape index: {}]
  %s5 = inlined_call_operand.<no memory space> [shape: f32[1,1], index: 5, kind: input, shape index: {}]
  %s6 = inlined_call_operand.hbm [shape: f32[64,128], index: 6, kind: output, shape index: {0}]
  %s7 = inlined_call_operand.vmem [shape: f32[2,1,1], index: 7, kind: output, shape index: {1}]
  %8 = xla_tuple %s6, %s7
  %s9 = sld [smem:[#allocation0]]
  $region81: #{tpu_custom_call.1} parent=0
    _
  %s11 = ssub.s32 1, %s9
  %s12 = scalar_select 0, %s11, %s9
  %13 = sst [smem:[#allocation2]] %s5
  $region1: #{tpu_custom_call.1} parent=0
    #allocation3 [shape = 'u8[49152]{0}', space=vmem, size = 0xc000, scoped, tag = 'input window, operand 0']
    #allocation4 [shape = 's32[2]{0}', space=sflag, size = 0x8, scoped, tag = 'scoped memory for tpu_custom_call.1']
    #allocation5 [shape = 's32[2]{0}', space=sflag, size = 0x8, scoped, tag = 'scoped memory for tpu_custom_call.1']
    #allocation6 [shape = 'u8[196608]{0}', space=vmem, size = 0x30000, scoped, tag = 'input window, operand 2, single buffered']
    #allocation7 [shape = 's32[1]{0}', space=sflag, size = 0x4, scoped, tag = 'scoped memory for tpu_custom_call.1']
    #allocation8 [shape = 'u8[73728]{0}', space=vmem, size = 0x12000, scoped, tag = 'input window, operand 3, single buffered']
    #allocation9 [shape = 'u8[16384]{0}', space=vmem, size = 0x4000, scoped, tag = 'output window, operand 0']
    %14 = vsyncpa [#allocation4], 0
    %s15 = scalar_lea.sflag [#allocation4], 1
    %16 = vsyncpa %s15, 0
    %17 = vsyncpa [#allocation7], 0
    %18 = vsyncpa [#allocation5], 0
    %s19 = scalar_lea.sflag [#allocation5], 1
    %20 = vsyncpa %s19, 0
    loop: start=0, step=1, limit=6
    $region2: #{tpu_custom_call.1} parent=1 // loop_pre_header
      _
    $region3: #{tpu_custom_call.1} parent=1 // loop_header
      %s22 = sphi 0, %s26
      %p23 = scmp.ge.s32.totalorder %s22, 6
      %s29 = sphi 0, %s41
      %s30 = sphi 0, %s37
      %s31 = sphi 0, %s29
      %s32 = sphi 0, %s30
      %s33 = sphi 0, %s31
      %s34 = sphi 0, %s32
      %s48 = sphi 0, %s50
      %s51 = sphi 0, %s48
      %s52 = sphi 0, %s51
      %s68 = sphi 0, %s52
      %s78 = sphi 0, %s80
      %s81 = sphi 0, %s78
      %s82 = sphi 0, %s81
      %s98 = sphi 0, %s82
      %s102 = sphi 0, %s102
      %s104 = sphi 0, %s102
      %s105 = sphi 0, %s104
      %s119 = sphi 0, %s105
      %s123 = sphi 0, %s123
      %s125 = sphi 0, %s123
      %s126 = sphi 0, %s125
      %s140 = sphi 0, %s126
      %s144 = sphi 0, %s144
      %s146 = sphi 0, %s144
      %s147 = sphi 0, %s146
      %s161 = sphi 0, %s147
      %s165 = sphi 0, %s165
      %s167 = sphi 0, %s165
      %s168 = sphi 0, %s167
      %s182 = sphi 0, %s168
      %s192 = sphi 0, %s194
      %s195 = sphi 0, %s192
      %s196 = sphi 0, %s195
      %s212 = sphi 0, %s196
      %s218 = sphi 0, %s220
      %s221 = sphi 0, %s218
      %s222 = sphi 0, %s221
      %s238 = sphi 0, %s222
    $region4: #{tpu_custom_call.1} parent=1 // loop_header_branch
      %25 = sbr.rel (%p23) target = $region8
    $region5: #{tpu_custom_call.1} parent=1 // loop_body
      %s27 = ssub.s32 %s22, 1
      %s28 = ssub.s32 %s22, 2
      %s35 = sadd.s32 1, %s30
      %p36 = scmp.ge.s32.totalorder %s35, 2
      %s37 = scalar_select %p36, 0, %s35
      %s38 = sadd.s32 1, %s29
      %s39 = scalar_select %p36, %s38, %s29
      %p40 = scmp.ge.s32.totalorder %s39, 2
      %s41 = scalar_select %p40, 0, %s39
      %s42 = smul.u32 %s29, 2
      %s43 = sadd.s32 %s42, %s30
      %s44 = smul.u32 %s41, 2
      %s45 = sadd.s32 %s44, %s37
      %s46 = ssub.s32 %s43, %s45
      %p47 = scmp.eq.s32.totalorder %s46, 0
      %s49 = sadd.s32 %s48, 1
      %s50 = scalar_select %p47, %s48, %s49
      %p53 = pneg %p47
      %p54 = scmp.eq.s32.totalorder %s22, 3
      %p55 = por %p53, %p54
      %p56 = scmp.ne.s32.totalorder %s48, %s51
      %p57 = scmp.eq.s32.totalorder %s22, 0
      %p58 = por %p56, %p57
      %p59 = scmp.ne.s32.totalorder %s48, %s51
      %p60 = scmp.eq.s32.totalorder %s27, 3
      %p61 = por %p59, %p60
      %p62 = scmp.ne.s32.totalorder %s51, %s52
      %p63 = scmp.eq.s32.totalorder %s27, 0
      %p64 = por %p62, %p63
      %p65 = scmp.ne.s32.totalorder %s51, %s52
      %p66 = scmp.eq.s32.totalorder %s28, 3
      %p67 = por %p65, %p66
      %p69 = scmp.ne.s32.totalorder %s52, %s68
      %p70 = scmp.eq.s32.totalorder %s28, 0
      %p71 = por %p69, %p70
      %s72 = smul.u32 %s29, 2
      %s73 = sadd.s32 %s72, %s30
      %s74 = smul.u32 %s41, 2
      %s75 = sadd.s32 %s74, %s37
      %s76 = ssub.s32 %s73, %s75
      %p77 = scmp.eq.s32.totalorder %s76, 0
      %s79 = sadd.s32 %s78, 1
      %s80 = scalar_select %p77, %s78, %s79
      %p83 = pneg %p77
      %p84 = scmp.eq.s32.totalorder %s22, 3
      %p85 = por %p83, %p84
      %p86 = scmp.ne.s32.totalorder %s78, %s81
      %p87 = scmp.eq.s32.totalorder %s22, 0
      %p88 = por %p86, %p87
      %p89 = scmp.ne.s32.totalorder %s78, %s81
      %p90 = scmp.eq.s32.totalorder %s27, 3
      %p91 = por %p89, %p90
      %p92 = scmp.ne.s32.totalorder %s81, %s82
      %p93 = scmp.eq.s32.totalorder %s27, 0
      %p94 = por %p92, %p93
      %p95 = scmp.ne.s32.totalorder %s81, %s82
      %p96 = scmp.eq.s32.totalorder %s28, 3
      %p97 = por %p95, %p96
      %p99 = scmp.ne.s32.totalorder %s82, %s98
      %p100 = scmp.eq.s32.totalorder %s28, 0
      %p101 = por %p99, %p100
      %s103 = sadd.s32 %s102, 1
      %p106 = scmp.eq.s32.totalorder %s22, 3
      %p107 = scmp.ne.s32.totalorder %s102, %s104
      %p108 = scmp.eq.s32.totalorder %s22, 0
      %p109 = por %p107, %p108
      %p110 = scmp.ne.s32.totalorder %s102, %s104
      %p111 = scmp.eq.s32.totalorder %s27, 3
      %p112 = por %p110, %p111
      %p113 = scmp.ne.s32.totalorder %s104, %s105
      %p114 = scmp.eq.s32.totalorder %s27, 0
      %p115 = por %p113, %p114
      %p116 = scmp.ne.s32.totalorder %s104, %s105
      %p117 = scmp.eq.s32.totalorder %s28, 3
      %p118 = por %p116, %p117
      %p120 = scmp.ne.s32.totalorder %s105, %s119
      %p121 = scmp.eq.s32.totalorder %s28, 0
      %p122 = por %p120, %p121
      %s124 = sadd.s32 %s123, 1
      %p127 = scmp.eq.s32.totalorder %s22, 3
      %p128 = scmp.ne.s32.totalorder %s123, %s125
      %p129 = scmp.eq.s32.totalorder %s22, 0
      %p130 = por %p128, %p129
      %p131 = scmp.ne.s32.totalorder %s123, %s125
      %p132 = scmp.eq.s32.totalorder %s27, 3
      %p133 = por %p131, %p132
      %p134 = scmp.ne.s32.totalorder %s125, %s126
      %p135 = scmp.eq.s32.totalorder %s27, 0
      %p136 = por %p134, %p135
      %p137 = scmp.ne.s32.totalorder %s125, %s126
      %p138 = scmp.eq.s32.totalorder %s28, 3
      %p139 = por %p137, %p138
      %p141 = scmp.ne.s32.totalorder %s126, %s140
      %p142 = scmp.eq.s32.totalorder %s28, 0
      %p143 = por %p141, %p142
      %s145 = sadd.s32 %s144, 1
      %p148 = scmp.eq.s32.totalorder %s22, 3
      %p149 = scmp.ne.s32.totalorder %s144, %s146
      %p150 = scmp.eq.s32.totalorder %s22, 0
      %p151 = por %p149, %p150
      %p152 = scmp.ne.s32.totalorder %s144, %s146
      %p153 = scmp.eq.s32.totalorder %s27, 3
      %p154 = por %p152, %p153
      %p155 = scmp.ne.s32.totalorder %s146, %s147
      %p156 = scmp.eq.s32.totalorder %s27, 0
      %p157 = por %p155, %p156
      %p158 = scmp.ne.s32.totalorder %s146, %s147
      %p159 = scmp.eq.s32.totalorder %s28, 3
      %p160 = por %p158, %p159
      %p162 = scmp.ne.s32.totalorder %s147, %s161
      %p163 = scmp.eq.s32.totalorder %s28, 0
      %p164 = por %p162, %p163
      %s166 = sadd.s32 %s165, 1
      %p169 = scmp.eq.s32.totalorder %s22, 3
      %p170 = scmp.ne.s32.totalorder %s165, %s167
      %p171 = scmp.eq.s32.totalorder %s22, 0
      %p172 = por %p170, %p171
      %p173 = scmp.ne.s32.totalorder %s165, %s167
      %p174 = scmp.eq.s32.totalorder %s27, 3
      %p175 = por %p173, %p174
      %p176 = scmp.ne.s32.totalorder %s167, %s168
      %p177 = scmp.eq.s32.totalorder %s27, 0
      %p178 = por %p176, %p177
      %p179 = scmp.ne.s32.totalorder %s167, %s168
      %p180 = scmp.eq.s32.totalorder %s28, 3
      %p181 = por %p179, %p180
      %p183 = scmp.ne.s32.totalorder %s168, %s182
      %p184 = scmp.eq.s32.totalorder %s28, 0
      %p185 = por %p183, %p184
      %s186 = smul.u32 %s29, 2
      %s187 = sadd.s32 %s186, %s30
      %s188 = smul.u32 %s41, 2
      %s189 = sadd.s32 %s188, %s37
      %s190 = ssub.s32 %s187, %s189
      %p191 = scmp.eq.s32.totalorder %s190, 0
      %s193 = sadd.s32 %s192, 1
      %s194 = scalar_select %p191, %s192, %s193
      %p197 = pneg %p191
      %p198 = scmp.eq.s32.totalorder %s22, 3
      %p199 = por %p197, %p198
      %p200 = scmp.ne.s32.totalorder %s192, %s195
      %p201 = scmp.eq.s32.totalorder %s22, 0
      %p202 = por %p200, %p201
      %p203 = scmp.ne.s32.totalorder %s192, %s195
      %p204 = scmp.eq.s32.totalorder %s27, 3
      %p205 = por %p203, %p204
      %p206 = scmp.ne.s32.totalorder %s195, %s196
      %p207 = scmp.eq.s32.totalorder %s27, 0
      %p208 = por %p206, %p207
      %p209 = scmp.ne.s32.totalorder %s195, %s196
      %p210 = scmp.eq.s32.totalorder %s28, 3
      %p211 = por %p209, %p210
      %p213 = scmp.ne.s32.totalorder %s196, %s212
      %p214 = scmp.eq.s32.totalorder %s28, 0
      %p215 = por %p213, %p214
      %s216 = ssub.s32 %s29, %s41
      %p217 = scmp.eq.s32.totalorder %s216, 0
      %s219 = sadd.s32 %s218, 1
      %s220 = scalar_select %p217, %s218, %s219
      %p223 = pneg %p217
      %p224 = scmp.eq.s32.totalorder %s22, 3
      %p225 = por %p223, %p224
      %p226 = scmp.ne.s32.totalorder %s218, %s221
      %p227 = scmp.eq.s32.totalorder %s22, 0
      %p228 = por %p226, %p227
      %p229 = scmp.ne.s32.totalorder %s218, %s221
      %p230 = scmp.eq.s32.totalorder %s27, 3
      %p231 = por %p229, %p230
      %p232 = scmp.ne.s32.totalorder %s221, %s222
      %p233 = scmp.eq.s32.totalorder %s27, 0
      %p234 = por %p232, %p233
      %p235 = scmp.ne.s32.totalorder %s221, %s222
      %p236 = scmp.eq.s32.totalorder %s28, 3
      %p237 = por %p235, %p236
      %p239 = scmp.ne.s32.totalorder %s222, %s238
      %p240 = scmp.eq.s32.totalorder %s28, 0
      %p241 = por %p239, %p240
      %p242 = scmp.le.s32.totalorder 1, %s22
      %p243 = scmp.lt.s32.totalorder %s22, 5
      %p244 = pnand %p242, %p243
      %p245 = pneg %p244
      // Predicated region
      $region9: #{tpu_custom_call.1} parent=5 // pred_check
        _
      $region10: #{tpu_custom_call.1} parent=5 // pred_check_branch
        %247 = sbr.rel (%p244) target = $region12
      $region11: #{tpu_custom_call.1} parent=5 // pred_region
        %s248 = ssub.s32 %s22, 1
        // Predicated region
        $region13: #{tpu_custom_call.1} parent=11 // pred_check
          %p249 = pneg %p115
        $region14: #{tpu_custom_call.1} parent=11 // pred_check_branch
          %251 = sbr.rel (%p249) target = $region16
        $region15: #{tpu_custom_call.1} parent=11 // pred_region
          %253 = vsyncadd [#allocation7], 0
          %s254 = sshll.u32 %s2, 4
          %s255 = int_to_ptr.hbm [resolvable:$true] %s254
          %s256 = sshll.u32 [#allocation6], 4
          %s257 = int_to_ptr.vmem [resolvable:$true] %s256
          %262 = dma.hbm_to_vmem [thread:$0]  %s255, 6144, %s257, [#allocation7], 64, 64, 4
        $region16: #{tpu_custom_call.1} parent=11 // pred_fallthru
          _
        // Predicated region
        $region17: #{tpu_custom_call.1} parent=11 // pred_check
          %p263 = pneg %p136
        $region18: #{tpu_custom_call.1} parent=11 // pred_check_branch
          %265 = sbr.rel (%p263) target = $region20
        $region19: #{tpu_custom_call.1} parent=11 // pred_region
          %267 = vsyncadd [#allocation7], 0
          %s268 = sshll.u32 %s3, 4
          %s269 = int_to_ptr.hbm [resolvable:$true] %s268
          %s270 = sshll.u32 [#allocation8], 4
          %s271 = int_to_ptr.vmem [resolvable:$true] %s270
          %276 = dma.hbm_to_vmem [thread:$0]  %s269, 2304, %s271, [#allocation7], 128, 128, 8
        $region20: #{tpu_custom_call.1} parent=11 // pred_fallthru
          _
        // Predicated region
        $region21: #{tpu_custom_call.1} parent=11 // pred_check
          %p277 = pneg %p157
        $region22: #{tpu_custom_call.1} parent=11 // pred_check_branch
          %279 = sbr.rel (%p277) target = $region24
        $region23: #{tpu_custom_call.1} parent=11 // pred_region
          _
        $region24: #{tpu_custom_call.1} parent=11 // pred_fallthru
          _
        // Predicated region
        $region25: #{tpu_custom_call.1} parent=11 // pred_check
          %p280 = pneg %p178
        $region26: #{tpu_custom_call.1} parent=11 // pred_check_branch
          %282 = sbr.rel (%p280) target = $region28
        $region27: #{tpu_custom_call.1} parent=11 // pred_region
          _
        $region28: #{tpu_custom_call.1} parent=11 // pred_fallthru
          _
      $region12: #{tpu_custom_call.1} parent=5 // pred_fallthru
        _
      %p283 = scmp.lt.s32.totalorder %s22, 4
      // Predicated region
      $region29: #{tpu_custom_call.1} parent=5 // pred_check
        %p284 = pneg %p283
      $region30: #{tpu_custom_call.1} parent=5 // pred_check_branch
        %286 = sbr.rel (%p284) target = $region32
      $region31: #{tpu_custom_call.1} parent=5 // pred_region
        // Predicated region
        $region33: #{tpu_custom_call.1} parent=31 // pred_check
          %p287 = pneg %p58
        $region34: #{tpu_custom_call.1} parent=31 // pred_check_branch
          %289 = sbr.rel (%p287) target = $region36
        $region35: #{tpu_custom_call.1} parent=31 // pred_region
          %s290 = sand.u32 %s48, 1
          %s291 = scalar_lea.sflag [#allocation4], %s290
          %s292 = sand.u32 %s48, 1
          %s293 = smul.addr %s292, 48
          %s294 = scalar_lea.vmem [#allocation3], %s293
          %s295 = smul.u32 %s29, 2
          %s296 = sadd.s32 %s295, %s30
          %s297 = smul.u32 2, %s296
          %299 = vsyncadd %s291, 0
          %s300 = smul.addr %s297, 6
          %s301 = smul.addr %s300, 4
          %s302 = scalar_lea.hbm %s0, %s301
          %s303 = sshll.u32 %s302, 4
          %s304 = int_to_ptr.hbm [resolvable:$true] %s303
          %s305 = sshll.u32 %s294, 4
          %s306 = int_to_ptr.vmem [resolvable:$true] %s305
          %311 = dma.hbm_to_vmem [thread:$0]  %s304, 768, %s306, %s291, 384, 384, 24
        $region36: #{tpu_custom_call.1} parent=31 // pred_fallthru
          _
        // Predicated region
        $region37: #{tpu_custom_call.1} parent=31 // pred_check
          %p312 = pneg %p88
        $region38: #{tpu_custom_call.1} parent=31 // pred_check_branch
          %314 = sbr.rel (%p312) target = $region40
        $region39: #{tpu_custom_call.1} parent=31 // pred_region
          %s315 = smul.u32 %s29, 2
          %s316 = sadd.s32 %s315, %s30
          %s317 = smul.u32 2, %s316
          %p318 = scmp.lt.s32.totalorder %s317, 7
          %s319 = scalar_select %p318, %s317, 7
          %s320 = smul.addr %s319, 8
          %s321 = scalar_lea.vmem %s1, %s320
          %s322 = smul.u32 %s29, 2
          %s323 = sadd.s32 %s322, %s30
          %s324 = smul.u32 2, %s323
        $region40: #{tpu_custom_call.1} parent=31 // pred_fallthru
          _
      $region32: #{tpu_custom_call.1} parent=5 // pred_fallthru
        _
      %p325 = scmp.le.s32.totalorder 1, %s22
      %p326 = scmp.lt.s32.totalorder %s22, 5
      %p327 = pnand %p325, %p326
      %p328 = pneg %p327
      // Predicated region
      $region41: #{tpu_custom_call.1} parent=5 // pred_check
        _
      $region42: #{tpu_custom_call.1} parent=5 // pred_check_branch
        %330 = sbr.rel (%p327) target = $region44
      $region43: #{tpu_custom_call.1} parent=5 // pred_region
        %s331 = ssub.s32 %s22, 1
        %s332 = sand.u32 %s51, 1
        %s333 = scalar_lea.sflag [#allocation4], %s332
        %s334 = sand.u32 %s51, 1
        %s335 = smul.addr %s334, 48
        %s336 = scalar_lea.vmem [#allocation3], %s335
        // Predicated region
        $region45: #{tpu_custom_call.1} parent=43 // pred_check
          %p337 = pneg %p64
        $region46: #{tpu_custom_call.1} parent=43 // pred_check_branch
          %339 = sbr.rel (%p337) target = $region48
        $region47: #{tpu_custom_call.1} parent=43 // pred_region
          %341 = dma.done %s333, 768
        $region48: #{tpu_custom_call.1} parent=43 // pred_fallthru
          _
        // Predicated region
        $region49: #{tpu_custom_call.1} parent=43 // pred_check
          %p342 = pneg %p115
        $region50: #{tpu_custom_call.1} parent=43 // pred_check_branch
          %344 = sbr.rel (%p342) target = $region52
        $region51: #{tpu_custom_call.1} parent=43 // pred_region
          %346 = dma.done [#allocation7], 6144
        $region52: #{tpu_custom_call.1} parent=43 // pred_fallthru
          _
        // Predicated region
        $region53: #{tpu_custom_call.1} parent=43 // pred_check
          %p347 = pneg %p136
        $region54: #{tpu_custom_call.1} parent=43 // pred_check_branch
          %349 = sbr.rel (%p347) target = $region56
        $region55: #{tpu_custom_call.1} parent=43 // pred_region
          %351 = dma.done [#allocation7], 2304
        $region56: #{tpu_custom_call.1} parent=43 // pred_fallthru
          _
        %s352 = sand.u32 %s51, 1
        %s353 = scalar_lea.sflag [#allocation4], %s352
        %s354 = sand.u32 %s51, 1
        %s355 = smul.addr %s354, 48
        %s356 = scalar_lea.vmem [#allocation3], %s355
        %p357 = pneg %p64
        %p358 = pneg %p61
        %s359 = smul.u32 %s31, 2
        %s360 = sadd.s32 %s359, %s32
        %s361 = smul.u32 2, %s360
        %p362 = scmp.lt.s32.totalorder %s361, 7
        %s363 = scalar_select %p362, %s361, 7
        %s364 = smul.addr %s363, 8
        %s365 = scalar_lea.vmem %s1, %s364
        %p366 = pneg %p94
        %p367 = pneg %p91
        %p368 = pneg %p115
        %p369 = pneg %p112
        %p370 = pneg %p136
        %p371 = pneg %p133
        %p372 = pneg %p157
        %p373 = pneg %p154
        %p374 = pneg %p178
        %p375 = pneg %p175
        %p376 = pneg %p208
        %p377 = pneg %p205
        %s378 = sand.u32 %s195, 1
        %s379 = scalar_lea.sflag [#allocation5], %s378
        %s380 = sand.u32 %s195, 1
        %s381 = smul.addr %s380, 16
        %s382 = scalar_lea.vmem [#allocation9], %s381
        %p383 = pneg %p234
        %p384 = pneg %p231
        %p385 = scmp.lt.s32.totalorder %s31, 1
        %s386 = scalar_select %p385, %s31, 1
        %s387 = scalar_lea.vmem %s7, %s386
        %s388 = smul.u32 %s31, 2
        %s389 = sadd.s32 %s388, %s32
        %s390 = smul.u32 2, %s389
        %s391 = smul.u32 %s31, 2
        %s392 = sadd.s32 %s391, %s32
        %s393 = smul.u32 2, %s392
        %p394 = scmp.lt.s32.totalorder %s393, 7
        %s395 = scalar_select %p394, %s393, 7
        %s396 = smul.addr %s395, 8
        %s397 = scalar_lea.vmem %s1, %s396
        %s398 = smul.u32 %s31, 2
        %s399 = sadd.s32 %s398, %s32
        %s400 = smul.u32 2, %s399
        %s401 = smul.u32 %s31, 2
        %s402 = sadd.s32 %s401, %s32
        %s403 = smul.u32 2, %s402
        %p404 = scmp.lt.s32.totalorder %s31, 1
        %s405 = scalar_select %p404, %s31, 1
        %s406 = scalar_lea.vmem %s7, %s405
        %v407 = vld [vmem:[%s336] sm:$0xff]
        %v408 = vld [vmem:[%s336 + $0x8] sm:$0xff]
        %v409 = vld [vmem:[%s336 + $0x10] sm:$0xff]
        %v410 = vld [vmem:[%s336 + $0x18] sm:$0xff]
        %v411 = vld [vmem:[%s336 + $0x20] sm:$0xff]
        %v412 = vld [vmem:[%s336 + $0x28] sm:$0xff]
        %v413 = vld [vmem:[#allocation6] sm:$0xf]
        %v414 = vld [vmem:[#allocation6 + $0x4] sm:$0xf]
        %v415 = vld [vmem:[#allocation6 + $0x8] sm:$0xf]
        %v416 = vld [vmem:[#allocation6 + $0xc] sm:$0xf]
        %v417 = vld [vmem:[#allocation6 + $0x10] sm:$0xf]
        %v418 = vld [vmem:[#allocation6 + $0x14] sm:$0xf]
        %v419 = vld [vmem:[#allocation6 + $0x18] sm:$0xf]
        %v420 = vld [vmem:[#allocation6 + $0x1c] sm:$0xf]
        %v421 = vld [vmem:[#allocation6 + $0x20] sm:$0xf]
        %v422 = vld [vmem:[#allocation6 + $0x24] sm:$0xf]
        %v423 = vld [vmem:[#allocation6 + $0x28] sm:$0xf]
        %v424 = vld [vmem:[#allocation6 + $0x2c] sm:$0xf]
        %v425 = vld [vmem:[#allocation6 + $0x30] sm:$0xf]
        %v426 = vld [vmem:[#allocation6 + $0x34] sm:$0xf]
        %v427 = vld [vmem:[#allocation6 + $0x38] sm:$0xf]
        %v428 = vld [vmem:[#allocation6 + $0x3c] sm:$0xf]
        %v429 = vld [vmem:[#allocation6 + $0x40] sm:$0xf]
        %v430 = vld [vmem:[#allocation6 + $0x44] sm:$0xf]
        %v431 = vld [vmem:[#allocation6 + $0x48] sm:$0xf]
        %v432 = vld [vmem:[#allocation6 + $0x4c] sm:$0xf]
        %v433 = vld [vmem:[#allocation6 + $0x50] sm:$0xf]
        %v434 = vld [vmem:[#allocation6 + $0x54] sm:$0xf]
        %v435 = vld [vmem:[#allocation6 + $0x58] sm:$0xf]
        %v436 = vld [vmem:[#allocation6 + $0x5c] sm:$0xf]
        %v437 = vld [vmem:[#allocation6 + $0x60] sm:$0xf]
        %v438 = vld [vmem:[#allocation6 + $0x64] sm:$0xf]
        %v439 = vld [vmem:[#allocation6 + $0x68] sm:$0xf]
        %v440 = vld [vmem:[#allocation6 + $0x6c] sm:$0xf]
        %v441 = vld [vmem:[#allocation6 + $0x70] sm:$0xf]
        %v442 = vld [vmem:[#allocation6 + $0x74] sm:$0xf]
        %v443 = vld [vmem:[#allocation6 + $0x78] sm:$0xf]
        %v444 = vld [vmem:[#allocation6 + $0x7c] sm:$0xf]
        %v445 = vld [vmem:[#allocation6 + $0x80] sm:$0xf]
        %v446 = vld [vmem:[#allocation6 + $0x84] sm:$0xf]
        %v447 = vld [vmem:[#allocation6 + $0x88] sm:$0xf]
        %v448 = vld [vmem:[#allocation6 + $0x8c] sm:$0xf]
        %v449 = vld [vmem:[#allocation6 + $0x90] sm:$0xf]
        %v450 = vld [vmem:[#allocation6 + $0x94] sm:$0xf]
        %v451 = vld [vmem:[#allocation6 + $0x98] sm:$0xf]
        %v452 = vld [vmem:[#allocation6 + $0x9c] sm:$0xf]
        %v453 = vld [vmem:[#allocation6 + $0xa0] sm:$0xf]
        %v454 = vld [vmem:[#allocation6 + $0xa4] sm:$0xf]
        %v455 = vld [vmem:[#allocation6 + $0xa8] sm:$0xf]
        %v456 = vld [vmem:[#allocation6 + $0xac] sm:$0xf]
        %v457 = vld [vmem:[#allocation6 + $0xb0] sm:$0xf]
        %v458 = vld [vmem:[#allocation6 + $0xb4] sm:$0xf]
        %v459 = vld [vmem:[#allocation6 + $0xb8] sm:$0xf]
        %v460 = vld [vmem:[#allocation6 + $0xbc] sm:$0xf]
        %v461 = vld [vmem:[#allocation6 + $0xc0] sm:$0xf]
        %v462 = vld [vmem:[#allocation6 + $0xc4] sm:$0xf]
        %v463 = vld [vmem:[#allocation6 + $0xc8] sm:$0xf]
        %v464 = vld [vmem:[#allocation6 + $0xcc] sm:$0xf]
        %v465 = vld [vmem:[#allocation6 + $0xd0] sm:$0xf]
        %v466 = vld [vmem:[#allocation6 + $0xd4] sm:$0xf]
        %v467 = vld [vmem:[#allocation6 + $0xd8] sm:$0xf]
        %v468 = vld [vmem:[#allocation6 + $0xdc] sm:$0xf]
        %v469 = vld [vmem:[#allocation6 + $0xe0] sm:$0xf]
        %v470 = vld [vmem:[#allocation6 + $0xe4] sm:$0xf]
        %v471 = vld [vmem:[#allocation6 + $0xe8] sm:$0xf]
        %v472 = vld [vmem:[#allocation6 + $0xec] sm:$0xf]
        %v473 = vld [vmem:[#allocation6 + $0xf0] sm:$0xf]
        %v474 = vld [vmem:[#allocation6 + $0xf4] sm:$0xf]
        %v475 = vld [vmem:[#allocation6 + $0xf8] sm:$0xf]
        %v476 = vld [vmem:[#allocation6 + $0xfc] sm:$0xf]
        %v477 = vld [vmem:[#allocation6 + $0x100] sm:$0xf]
        %v478 = vld [vmem:[#allocation6 + $0x104] sm:$0xf]
        %v479 = vld [vmem:[#allocation6 + $0x108] sm:$0xf]
        %v480 = vld [vmem:[#allocation6 + $0x10c] sm:$0xf]
        %v481 = vld [vmem:[#allocation6 + $0x110] sm:$0xf]
        %v482 = vld [vmem:[#allocation6 + $0x114] sm:$0xf]
        %v483 = vld [vmem:[#allocation6 + $0x118] sm:$0xf]
        %v484 = vld [vmem:[#allocation6 + $0x11c] sm:$0xf]
        %v485 = vld [vmem:[#allocation6 + $0x120] sm:$0xf]
        %v486 = vld [vmem:[#allocation6 + $0x124] sm:$0xf]
        %v487 = vld [vmem:[#allocation6 + $0x128] sm:$0xf]
        %v488 = vld [vmem:[#allocation6 + $0x12c] sm:$0xf]
        %v489 = vld [vmem:[#allocation6 + $0x130] sm:$0xf]
        %v490 = vld [vmem:[#allocation6 + $0x134] sm:$0xf]
        %v491 = vld [vmem:[#allocation6 + $0x138] sm:$0xf]
        %v492 = vld [vmem:[#allocation6 + $0x13c] sm:$0xf]
        %v493 = vld [vmem:[#allocation6 + $0x140] sm:$0xf]
        %v494 = vld [vmem:[#allocation6 + $0x144] sm:$0xf]
        %v495 = vld [vmem:[#allocation6 + $0x148] sm:$0xf]
        %v496 = vld [vmem:[#allocation6 + $0x14c] sm:$0xf]
        %v497 = vld [vmem:[#allocation6 + $0x150] sm:$0xf]
        %v498 = vld [vmem:[#allocation6 + $0x154] sm:$0xf]
        %v499 = vld [vmem:[#allocation6 + $0x158] sm:$0xf]
        %v500 = vld [vmem:[#allocation6 + $0x15c] sm:$0xf]
        %v501 = vld [vmem:[#allocation6 + $0x160] sm:$0xf]
        %v502 = vld [vmem:[#allocation6 + $0x164] sm:$0xf]
        %v503 = vld [vmem:[#allocation6 + $0x168] sm:$0xf]
        %v504 = vld [vmem:[#allocation6 + $0x16c] sm:$0xf]
        %v505 = vld [vmem:[#allocation6 + $0x170] sm:$0xf]
        %v506 = vld [vmem:[#allocation6 + $0x174] sm:$0xf]
        %v507 = vld [vmem:[#allocation6 + $0x178] sm:$0xf]
        %v508 = vld [vmem:[#allocation6 + $0x17c] sm:$0xf]
        %v509 = vld [vmem:[%s4] sm:$0x1]
        %v510 = vperm.slane %v509, 0
        %v517 = vunpack.c.l.b16 %v407
        %v518 = vunpack.c.h.b16 %v407
        %v519 = vunpack.c.l.b16 %v408
        %v520 = vunpack.c.h.b16 %v408
        %v521 = vunpack.c.l.b16 %v409
        %v522 = vunpack.c.h.b16 %v409
        %v523 = vunpack.c.l.b16 %v410
        %v524 = vunpack.c.h.b16 %v410
        %v525 = vunpack.c.l.b16 %v411
        %v526 = vunpack.c.h.b16 %v411
        %v527 = vunpack.c.l.b16 %v412
        %v528 = vunpack.c.h.b16 %v412
        %v529 = vpack.c.b16 %v523, %v517
        %v530 = vpack.c.b16 %v524, %v518
        %v531 = vpack.c.b16 %v525, %v519
        %v532 = vpack.c.b16 %v526, %v520
        %v533 = vpack.c.b16 %v527, %v521
        %v534 = vpack.c.b16 %v528, %v522
        %v637 = vunpack.c.l.b16 %v413
        %v638 = vunpack.c.l.b16 %v414
        %v639 = vunpack.c.l.b16 %v415
        %v640 = vunpack.c.l.b16 %v416
        %v641 = vunpack.c.l.b16 %v417
        %v642 = vunpack.c.l.b16 %v418
        %v643 = vunpack.c.l.b16 %v419
        %v644 = vunpack.c.l.b16 %v420
        %v645 = vunpack.c.l.b16 %v421
        %v646 = vunpack.c.l.b16 %v422
        %v647 = vunpack.c.l.b16 %v423
        %v648 = vunpack.c.l.b16 %v424
        %v649 = vunpack.c.l.b16 %v425
        %v650 = vunpack.c.l.b16 %v426
        %v651 = vunpack.c.l.b16 %v427
        %v652 = vunpack.c.l.b16 %v428
        %v653 = vunpack.c.l.b16 %v429
        %v654 = vunpack.c.l.b16 %v430
        %v655 = vunpack.c.l.b16 %v431
        %v656 = vunpack.c.l.b16 %v432
        %v657 = vunpack.c.l.b16 %v433
        %v658 = vunpack.c.l.b16 %v434
        %v659 = vunpack.c.l.b16 %v435
        %v660 = vunpack.c.l.b16 %v436
        %v661 = vunpack.c.l.b16 %v437
        %v662 = vunpack.c.l.b16 %v438
        %v663 = vunpack.c.l.b16 %v439
        %v664 = vunpack.c.l.b16 %v440
        %v665 = vunpack.c.l.b16 %v441
        %v666 = vunpack.c.l.b16 %v442
        %v667 = vunpack.c.l.b16 %v443
        %v668 = vunpack.c.l.b16 %v444
        %v669 = vunpack.c.l.b16 %v445
        %v670 = vunpack.c.l.b16 %v446
        %v671 = vunpack.c.l.b16 %v447
        %v672 = vunpack.c.l.b16 %v448
        %v673 = vunpack.c.l.b16 %v449
        %v674 = vunpack.c.l.b16 %v450
        %v675 = vunpack.c.l.b16 %v451
        %v676 = vunpack.c.l.b16 %v452
        %v677 = vunpack.c.l.b16 %v453
        %v678 = vunpack.c.l.b16 %v454
        %v679 = vunpack.c.l.b16 %v455
        %v680 = vunpack.c.l.b16 %v456
        %v681 = vunpack.c.l.b16 %v457
        %v682 = vunpack.c.l.b16 %v458
        %v683 = vunpack.c.l.b16 %v459
        %v684 = vunpack.c.l.b16 %v460
        %v685 = vunpack.c.l.b16 %v461
        %v686 = vunpack.c.l.b16 %v462
        %v687 = vunpack.c.l.b16 %v463
        %v688 = vunpack.c.l.b16 %v464
        %v689 = vunpack.c.l.b16 %v465
        %v690 = vunpack.c.l.b16 %v466
        %v691 = vunpack.c.l.b16 %v467
        %v692 = vunpack.c.l.b16 %v468
        %v693 = vunpack.c.l.b16 %v469
        %v694 = vunpack.c.l.b16 %v470
        %v695 = vunpack.c.l.b16 %v471
        %v696 = vunpack.c.l.b16 %v472
        %v697 = vunpack.c.l.b16 %v473
        %v698 = vunpack.c.l.b16 %v474
        %v699 = vunpack.c.l.b16 %v475
        %v700 = vunpack.c.l.b16 %v476
        %v701 = vunpack.c.l.b16 %v477
        %v702 = vunpack.c.l.b16 %v478
        %v703 = vunpack.c.l.b16 %v479
        %v704 = vunpack.c.l.b16 %v480
        %v705 = vunpack.c.l.b16 %v481
        %v706 = vunpack.c.l.b16 %v482
        %v707 = vunpack.c.l.b16 %v483
        %v708 = vunpack.c.l.b16 %v484
        %v709 = vunpack.c.l.b16 %v485
        %v710 = vunpack.c.l.b16 %v486
        %v711 = vunpack.c.l.b16 %v487
        %v712 = vunpack.c.l.b16 %v488
        %v713 = vunpack.c.l.b16 %v489
        %v714 = vunpack.c.l.b16 %v490
        %v715 = vunpack.c.l.b16 %v491
        %v716 = vunpack.c.l.b16 %v492
        %v717 = vunpack.c.l.b16 %v493
        %v718 = vunpack.c.l.b16 %v494
        %v719 = vunpack.c.l.b16 %v495
        %v720 = vunpack.c.l.b16 %v496
        %v721 = vunpack.c.l.b16 %v497
        %v722 = vunpack.c.l.b16 %v498
        %v723 = vunpack.c.l.b16 %v499
        %v724 = vunpack.c.l.b16 %v500
        %v725 = vunpack.c.l.b16 %v501
        %v726 = vunpack.c.l.b16 %v502
        %v727 = vunpack.c.l.b16 %v503
        %v728 = vunpack.c.l.b16 %v504
        %v729 = vunpack.c.l.b16 %v505
        %v730 = vunpack.c.l.b16 %v506
        %v731 = vunpack.c.l.b16 %v507
        %v732 = vunpack.c.l.b16 %v508
        %v733 = vpack.c.b16 %v638, %v637
        %v734 = vpack.c.b16 %v640, %v639
        %v735 = vpack.c.b16 %v642, %v641
        %v736 = vpack.c.b16 %v644, %v643
        %v737 = vpack.c.b16 %v646, %v645
        %v738 = vpack.c.b16 %v648, %v647
        %v739 = vpack.c.b16 %v650, %v649
        %v740 = vpack.c.b16 %v652, %v651
        %v741 = vpack.c.b16 %v654, %v653
        %v742 = vpack.c.b16 %v656, %v655
        %v743 = vpack.c.b16 %v658, %v657
        %v744 = vpack.c.b16 %v660, %v659
        %v745 = vpack.c.b16 %v662, %v661
        %v746 = vpack.c.b16 %v664, %v663
        %v747 = vpack.c.b16 %v666, %v665
        %v748 = vpack.c.b16 %v668, %v667
        %v749 = vpack.c.b16 %v670, %v669
        %v750 = vpack.c.b16 %v672, %v671
        %v751 = vpack.c.b16 %v674, %v673
        %v752 = vpack.c.b16 %v676, %v675
        %v753 = vpack.c.b16 %v678, %v677
        %v754 = vpack.c.b16 %v680, %v679
        %v755 = vpack.c.b16 %v682, %v681
        %v756 = vpack.c.b16 %v684, %v683
        %v757 = vpack.c.b16 %v686, %v685
        %v758 = vpack.c.b16 %v688, %v687
        %v759 = vpack.c.b16 %v690, %v689
        %v760 = vpack.c.b16 %v692, %v691
        %v761 = vpack.c.b16 %v694, %v693
        %v762 = vpack.c.b16 %v696, %v695
        %v763 = vpack.c.b16 %v698, %v697
        %v764 = vpack.c.b16 %v700, %v699
        %v765 = vpack.c.b16 %v702, %v701
        %v766 = vpack.c.b16 %v704, %v703
        %v767 = vpack.c.b16 %v706, %v705
        %v768 = vpack.c.b16 %v708, %v707
        %v769 = vpack.c.b16 %v710, %v709
        %v770 = vpack.c.b16 %v712, %v711
        %v771 = vpack.c.b16 %v714, %v713
        %v772 = vpack.c.b16 %v716, %v715
        %v773 = vpack.c.b16 %v718, %v717
        %v774 = vpack.c.b16 %v720, %v719
        %v775 = vpack.c.b16 %v722, %v721
        %v776 = vpack.c.b16 %v724, %v723
        %v777 = vpack.c.b16 %v726, %v725
        %v778 = vpack.c.b16 %v728, %v727
        %v779 = vpack.c.b16 %v730, %v729
        %v780 = vpack.c.b16 %v732, %v731
        %829 = vmatpush.bf16.msra.mxu0 %v740
        %830 = vmatpush.bf16.msra.mxu0 %v739
        %831 = vmatpush.bf16.msra.mxu0 %v738
        %832 = vmatpush.bf16.msra.mxu0 %v737
        %833 = vmatpush.bf16.msra.mxu0 %v736
        %834 = vmatpush.bf16.msra.mxu0 %v735
        %835 = vmatpush.bf16.msra.mxu0 %v734
        %836 = vmatpush.bf16.msra.mxu0 %v733
        %837 = vmatmul.bf16.gmra.mxu0 %v529
        %v838 = vpop.f32.mrf.mxu0
        %v839 = vadd.f32 %v510, %v838
        %v840 = vpop.f32.mrf.mxu0
        %v841 = vadd.f32 %v510, %v840
        %842 = vdwg.mxu0
        %843 = vmatpush.bf16.msra.mxu0 %v748
        %844 = vmatpush.bf16.msra.mxu0 %v747
        %845 = vmatpush.bf16.msra.mxu0 %v746
        %846 = vmatpush.bf16.msra.mxu0 %v745
        %847 = vmatpush.bf16.msra.mxu0 %v744
        %848 = vmatpush.bf16.msra.mxu0 %v743
        %849 = vmatpush.bf16.msra.mxu0 %v742
        %850 = vmatpush.bf16.msra.mxu0 %v741
        %851 = vmatmul.bf16.gmra.mxu0 %v530
        %v852 = vpop.f32.mrf.mxu0
        %v853 = vadd.f32 %v839, %v852
        %v854 = vpop.f32.mrf.mxu0
        %v855 = vadd.f32 %v841, %v854
        %856 = vdwg.mxu0
        %857 = vmatpush.bf16.msra.mxu0 %v756
        %858 = vmatpush.bf16.msra.mxu0 %v755
        %859 = vmatpush.bf16.msra.mxu0 %v754
        %860 = vmatpush.bf16.msra.mxu0 %v753
        %861 = vmatpush.bf16.msra.mxu0 %v752
        %862 = vmatpush.bf16.msra.mxu0 %v751
        %863 = vmatpush.bf16.msra.mxu0 %v750
        %864 = vmatpush.bf16.msra.mxu0 %v749
        %865 = vmatmul.bf16.gmra.mxu0 %v531
        %v866 = vpop.f32.mrf.mxu0
        %v867 = vadd.f32 %v853, %v866
        %v868 = vpop.f32.mrf.mxu0
        %v869 = vadd.f32 %v855, %v868
        %870 = vdwg.mxu0
        %871 = vmatpush.bf16.msra.mxu0 %v764
        %872 = vmatpush.bf16.msra.mxu0 %v763
        %873 = vmatpush.bf16.msra.mxu0 %v762
        %874 = vmatpush.bf16.msra.mxu0 %v761
        %875 = vmatpush.bf16.msra.mxu0 %v760
        %876 = vmatpush.bf16.msra.mxu0 %v759
        %877 = vmatpush.bf16.msra.mxu0 %v758
        %878 = vmatpush.bf16.msra.mxu0 %v757
        %879 = vmatmul.bf16.gmra.mxu0 %v532
        %v880 = vpop.f32.mrf.mxu0
        %v881 = vadd.f32 %v867, %v880
        %v882 = vpop.f32.mrf.mxu0
        %v883 = vadd.f32 %v869, %v882
        %884 = vdwg.mxu0
        %885 = vmatpush.bf16.msra.mxu0 %v772
        %886 = vmatpush.bf16.msra.mxu0 %v771
        %887 = vmatpush.bf16.msra.mxu0 %v770
        %888 = vmatpush.bf16.msra.mxu0 %v769
        %889 = vmatpush.bf16.msra.mxu0 %v768
        %890 = vmatpush.bf16.msra.mxu0 %v767
        %891 = vmatpush.bf16.msra.mxu0 %v766
        %892 = vmatpush.bf16.msra.mxu0 %v765
        %893 = vmatmul.bf16.gmra.mxu0 %v533
        %v894 = vpop.f32.mrf.mxu0
        %v895 = vadd.f32 %v881, %v894
        %v896 = vpop.f32.mrf.mxu0
        %v897 = vadd.f32 %v883, %v896
        %898 = vdwg.mxu0
        %899 = vmatpush.bf16.msra.mxu0 %v780
        %900 = vmatpush.bf16.msra.mxu0 %v779
        %901 = vmatpush.bf16.msra.mxu0 %v778
        %902 = vmatpush.bf16.msra.mxu0 %v777
        %903 = vmatpush.bf16.msra.mxu0 %v776
        %904 = vmatpush.bf16.msra.mxu0 %v775
        %905 = vmatpush.bf16.msra.mxu0 %v774
        %906 = vmatpush.bf16.msra.mxu0 %v773
        %907 = vmatmul.bf16.gmra.mxu0 %v534
        %v908 = vpop.f32.mrf.mxu0
        %v909 = vadd.f32 %v895, %v908
        %v910 = vpop.f32.mrf.mxu0
        %v911 = vadd.f32 %v897, %v910
        %912 = vdwg.mxu0
        %v913 = vtanh.pop %v909
        %v914 = vtanh.pop %v911
        %915 = vst [vmem:[%s382] sm:$0xff] %v913
        %916 = vst [vmem:[%s382 + $0x8] sm:$0xff] %v914
        %v917 = vld [vmem:[#allocation8] sm:$0xff]
        %v918 = vld [vmem:[#allocation8 + $0x8] sm:$0xff]
        %v919 = vld [vmem:[#allocation8 + $0x10] sm:$0xff]
        %v920 = vld [vmem:[#allocation8 + $0x18] sm:$0xff]
        %v921 = vld [vmem:[#allocation8 + $0x20] sm:$0xff]
        %v922 = vld [vmem:[#allocation8 + $0x28] sm:$0xff]
        %v923 = vld [vmem:[#allocation8 + $0x30] sm:$0xff]
        %v924 = vld [vmem:[#allocation8 + $0x38] sm:$0xff]
        %v925 = vld [vmem:[#allocation8 + $0x40] sm:$0xff]
        %v926 = vld [vmem:[#allocation8 + $0x48] sm:$0xff]
        %v927 = vld [vmem:[#allocation8 + $0x50] sm:$0xff]
        %v928 = vld [vmem:[#allocation8 + $0x58] sm:$0xff]
        %v929 = vld [vmem:[#allocation8 + $0x60] sm:$0xff]
        %v930 = vld [vmem:[#allocation8 + $0x68] sm:$0xff]
        %v931 = vld [vmem:[#allocation8 + $0x70] sm:$0xff]
        %v932 = vld [vmem:[#allocation8 + $0x78] sm:$0xff]
        %v933 = vld [vmem:[%s397] sm:$0xff]
        %v934 = vld [vmem:[%s397 + $0x8] sm:$0xff]
        %v935 = vld [vmem:[#allocation8 + $0x80] sm:$0xff]
        %v936 = vld [vmem:[#allocation8 + $0x88] sm:$0xff]
        %vm937 = vcmask 130048
        %v939 = vsel %vm937, %v933, 0
        %v942 = vsel %vm937, %v934, 0
        %944 = vmatpush.msra.mxu0 0.0
        %945 = vmatpush.msra.mxu0 0.0
        %946 = vmatpush.msra.mxu0 0.0
        %947 = vmatpush.msra.mxu0 0.0
        %948 = vmatpush.msra.mxu0 0.0
        %949 = vmatpush.msra.mxu0 0.0
        %950 = vmatpush.msra.mxu0 0.0
        %951 = vmatpush.msra.mxu0 0.0
        %952 = vmatpush.msra.mxu0 0.0
        %953 = vmatpush.msra.mxu0 0.0
        %954 = vmatpush.msra.mxu0 0.0
        %955 = vmatpush.msra.mxu0 0.0
        %956 = vmatpush.msra.mxu0 0.0
        %957 = vmatpush.msra.mxu0 0.0
        %958 = vmatpush.msra.mxu0 %v936
        %959 = vmatpush.msra.mxu0 %v935
        %960 = vmatmul.f32.gmra.mxu0 %v939
        %v961 = vpop.f32.mrf.mxu0
        %v962 = vadd.f32 0.0, %v961
        %963 = vmatmul.f32.gmra.mxu0 %v942
        %v964 = vpop.f32.mrf.mxu0
        %v965 = vadd.f32 0.0, %v964
        %966 = vdwg.mxu0
        %967 = vmatpush.msra.mxu0 %v932
        %968 = vmatpush.msra.mxu0 %v931
        %969 = vmatpush.msra.mxu0 %v930
        %970 = vmatpush.msra.mxu0 %v929
        %971 = vmatpush.msra.mxu0 %v928
        %972 = vmatpush.msra.mxu0 %v927
        %973 = vmatpush.msra.mxu0 %v926
        %974 = vmatpush.msra.mxu0 %v925
        %975 = vmatpush.msra.mxu0 %v924
        %976 = vmatpush.msra.mxu0 %v923
        %977 = vmatpush.msra.mxu0 %v922
        %978 = vmatpush.msra.mxu0 %v921
        %979 = vmatpush.msra.mxu0 %v920
        %980 = vmatpush.msra.mxu0 %v919
        %981 = vmatpush.msra.mxu0 %v918
        %982 = vmatpush.msra.mxu0 %v917
        %983 = vmatmul.f32.gmra.mxu0 %v913
        %v984 = vpop.f32.mrf.mxu0
        %v985 = vadd.f32 %v962, %v984
        %986 = vmatmul.f32.gmra.mxu0 %v914
        %v987 = vpop.f32.mrf.mxu0
        %v988 = vadd.f32 %v965, %v987
        %989 = vdwg.mxu0
        %v990 = vld [vmem:[%s4 + $0x1] sm:$0x1]
        %v991 = vperm.slane %v990, 0
        %v992 = vadd.f32 %v985, %v991
        %v993 = vadd.f32 %v988, %v991
        %v994 = vmax.f32 %v992, 0.0
        %v995 = vmax.f32 %v993, 0.0
        %v996 = vld [vmem:[%s4 + $0x2] sm:$0x1]
        %v997 = vperm.slane %v996, 0
        %v998 = vmul.f32 %v994, %v997
        %v999 = vmul.f32 %v995, %v997
        %1000 = vadd.xlane.f32.xlu0 %v998
        %v1001 = vpop.xlane.xlu0 %1000
        %1002 = vadd.xlane.f32.xlu0 %v999
        %v1003 = vpop.xlane.xlu0 %1002
        %v1004 = vadd.f32 %v1001, %v1003
        %v1005 = vrot.slane %v1004, 4
        %v1006 = vadd.f32 %v1004, %v1005
        %v1007 = vrot.slane %v1006, 2
        %v1008 = vadd.f32 %v1006, %v1007
        %v1009 = vrot.slane %v1008, 1
        %v1010 = vadd.f32 %v1008, %v1009
        %s1011 = sld [smem:[#allocation2]]
        %s1012 = smul.f32 %s1011, 16.0
        %v1013 = vstv %s1012
        %v1014 = vadd.f32 %v1010, %v1013
        %p1015 = scmp.eq.s32.totalorder %s32, 0
        // Predicated region
        $region57: #{tpu_custom_call.1} parent=43 // pred_check
          %p1016 = pneg %p1015
        $region58: #{tpu_custom_call.1} parent=43 // pred_check_branch
          %1018 = sbr.rel (%p1016) target = $region60
        $region59: #{tpu_custom_call.1} parent=43 // pred_region
          %vm1019 = vcmask 0
          %1020 = vst.msk [vmem:[%s406] sm:$0x1] %vm1019, 0.0
        $region60: #{tpu_custom_call.1} parent=43 // pred_fallthru
          _
        %v1021 = vld [vmem:[%s406] sm:$0x1]
        %v1022 = vadd.f32 %v1021, %v1014
        %vm1023 = vcmask 0
        %1024 = vst.msk [vmem:[%s406] sm:$0x1] %vm1023, %v1022
        %s1025 = sand.u32 %s195, 1
        %s1026 = scalar_lea.sflag [#allocation5], %s1025
        %s1027 = sand.u32 %s195, 1
        %s1028 = smul.addr %s1027, 16
        %s1029 = scalar_lea.vmem [#allocation9], %s1028
        %p1030 = scmp.lt.s32.totalorder %s31, 1
        %s1031 = scalar_select %p1030, %s31, 1
        %s1032 = scalar_lea.vmem %s7, %s1031
        // Predicated region
        $region61: #{tpu_custom_call.1} parent=43 // pred_check
          %p1033 = pneg %p205
        $region62: #{tpu_custom_call.1} parent=43 // pred_check_branch
          %1035 = sbr.rel (%p1033) target = $region64
        $region63: #{tpu_custom_call.1} parent=43 // pred_region
          %s1036 = smul.u32 %s31, 2
          %s1037 = sadd.s32 %s1036, %s32
          %s1038 = smul.u32 2, %s1037
          %1040 = vsyncadd %s1026, 0
          %s1041 = smul.addr %s1038, 8
          %s1042 = scalar_lea.hbm %s6, %s1041
          %s1043 = sshll.u32 %s1029, 4
          %s1044 = int_to_ptr.vmem [resolvable:$true] %s1043
          %s1045 = sshll.u32 %s1042, 4
          %s1046 = int_to_ptr.hbm [resolvable:$true] %s1045
          %1051 = dma.vmem_to_hbm [thread:$0]  %s1044, 256, %s1046, %s1026, 128, 128, 8
        $region64: #{tpu_custom_call.1} parent=43 // pred_fallthru
          _
        // Predicated region
        $region65: #{tpu_custom_call.1} parent=43 // pred_check
          %p1052 = pneg %p231
        $region66: #{tpu_custom_call.1} parent=43 // pred_check_branch
          %1054 = sbr.rel (%p1052) target = $region68
        $region67: #{tpu_custom_call.1} parent=43 // pred_region
          _
        $region68: #{tpu_custom_call.1} parent=43 // pred_fallthru
          _
      $region44: #{tpu_custom_call.1} parent=5 // pred_fallthru
        _
      %p1055 = scmp.le.s32.totalorder 2, %s22
      // Predicated region
      $region69: #{tpu_custom_call.1} parent=5 // pred_check
        %p1056 = pneg %p1055
      $region70: #{tpu_custom_call.1} parent=5 // pred_check_branch
        %1058 = sbr.rel (%p1056) target = $region72
      $region71: #{tpu_custom_call.1} parent=5 // pred_region
        %s1059 = ssub.s32 %s22, 2
        // Predicated region
        $region73: #{tpu_custom_call.1} parent=71 // pred_check
          %p1060 = pneg %p211
        $region74: #{tpu_custom_call.1} parent=71 // pred_check_branch
          %1062 = sbr.rel (%p1060) target = $region76
        $region75: #{tpu_custom_call.1} parent=71 // pred_region
          %s1063 = sand.u32 %s196, 1
          %s1064 = scalar_lea.sflag [#allocation5], %s1063
          %s1065 = sand.u32 %s196, 1
          %s1066 = smul.addr %s1065, 16
          %s1067 = scalar_lea.vmem [#allocation9], %s1066
          %1069 = dma.done %s1064, 256
        $region76: #{tpu_custom_call.1} parent=71 // pred_fallthru
          _
        // Predicated region
        $region77: #{tpu_custom_call.1} parent=71 // pred_check
          %p1070 = pneg %p237
        $region78: #{tpu_custom_call.1} parent=71 // pred_check_branch
          %1072 = sbr.rel (%p1070) target = $region80
        $region79: #{tpu_custom_call.1} parent=71 // pred_region
          %p1073 = scmp.lt.s32.totalorder %s33, 1
          %s1074 = scalar_select %p1073, %s33, 1
          %s1075 = scalar_lea.vmem %s7, %s1074
        $region80: #{tpu_custom_call.1} parent=71 // pred_fallthru
          _
      $region72: #{tpu_custom_call.1} parent=5 // pred_fallthru
        _
    $region6: #{tpu_custom_call.1} parent=1 // loop_footer
      %s26 = sadd.s32 1, %s22
    $region7: #{tpu_custom_call.1} parent=1 // loop_footer_branch
      %21 = sbr.rel target = $region3
    $region8: #{tpu_custom_call.1} parent=1 // loop_exit
      _
    %1076 = vsyncpa [#allocation4], 1
    %s1077 = scalar_lea.sflag [#allocation4], 1
    %1078 = vsyncpa %s1077, 1
    %1079 = vsyncpa [#allocation7], 1
    %1080 = vsyncpa [#allocation5], 1
    %s1081 = scalar_lea.sflag [#allocation5], 1
    %1082 = vsyncpa %s1081, 1

</llo_original>
